<compile_context>
chip_gen: v5e
topology: v5e:2x2
jax: 0.10.0
libtpu: 0.0.40
codegen_flags: <defaults>
</compile_context>

<pallas_src>
import functools

import jax
import jax.numpy as jnp
from jax.experimental import pallas as pl
from jax.experimental.pallas import tpu as pltpu


# --------------------------------------------------------------------------
# Kernels
# --------------------------------------------------------------------------
def _linear_kernel_resident(x_ref, w_ref, b_ref, o_ref):
    """Mode A: full-K blocks, weight strip resident across the m axis."""
    acc = jax.lax.dot_general(
        x_ref[...],                       # (tm, K)
        w_ref[...],                       # (tn, K)  -- PyTorch (out, in) layout
        dimension_numbers=(((1,), (1,)), ((), ())),   # contract K with K
        preferred_element_type=jnp.float32,
    )
    o_ref[...] = (acc + b_ref[...].astype(jnp.float32)).astype(o_ref.dtype)


def _linear_kernel_acc(x_ref, w_ref, b_ref, o_ref, acc_ref):
    """Mode B (large K fallback): K-tiled with an f32 VMEM accumulator."""
    k = pl.program_id(2)
    part = jax.lax.dot_general(
        x_ref[...],                       # (tm, tk)
        w_ref[...],                       # (tn, tk)
        dimension_numbers=(((1,), (1,)), ((), ())),
        preferred_element_type=jnp.float32,
    )

    @pl.when(k == 0)
    def _():
        acc_ref[...] = part               # first step: write (no zero + add)

    @pl.when(k > 0)
    def _():
        acc_ref[...] += part

    @pl.when(k == pl.num_programs(2) - 1)
    def _():
        o_ref[...] = (acc_ref[...] + b_ref[...].astype(jnp.float32)).astype(
            o_ref.dtype)


# --------------------------------------------------------------------------
# Tile / VMEM heuristics
# --------------------------------------------------------------------------
def _round_up(x, m):
    return ((x + m - 1) // m) * m


def _vmem_limits():
    """Generation-aware (budget_for_tiles, vmem_limit_bytes)."""
    phys = 64 * 1024 * 1024  # conservative default (v7x per-core VMEM)
    try:
        info = pltpu.get_tpu_info()
        cap = getattr(info, "vmem_capacity_bytes", None)
        if cap:
            phys = int(cap)
    except Exception:
        pass
    budget = min(int(phys * 0.6), 80 * 1024 * 1024)   # tile-selection budget
    limit = min(int(phys * 3 // 4), 100 * 1024 * 1024)  # explicit scoped limit
    return budget, limit


def _select_tiles(M, N, K, itemsize, budget, tm_hint=None, tn_hint=None):
    """Pick ('A', tm, tn, None) resident-strip tiles, or ('B', tm, tn, tk)."""
    tm_opts = (tm_hint,) if tm_hint else (512, 256, 128)
    if N <= (tn_hint or 512):
        tn_opts = (N,)                    # full-N block (always legal)
    else:
        tn_opts = (tn_hint,) if tn_hint else (512, 256, 128)

    for tn in tn_opts:
        for t in tm_opts:
            tm = M if M <= t else t       # full-M block when it fits one tile
            # double-buffered x tile + weight strip + out tile + bias row
            foot = 2 * itemsize * (tm * K + tn * K + tm * tn + tn)
            if foot <= budget:
                return "A", int(tm), int(tn), None

    # Very large K: tile K and accumulate (footprint always < ~4 MiB here).
    tm = M if M <= 256 else 256
    tn = N if N <= 256 else 256
    return "B", int(tm), int(tn), 512


# --------------------------------------------------------------------------
# Wrapper
# --------------------------------------------------------------------------
@functools.partial(jax.jit, static_argnames=("tm", "tn"))
def linear_norm(x, weight, bias=None, *, tm=None, tn=None):
    """Equivalent of LinearNorm.forward (spectral_norm=False path).

    x:      (..., in_channels)
    weight: (out_channels, in_channels)   -- PyTorch convention, NOT transposed
    bias:   (out_channels,) or None
    """
    K = x.shape[-1]
    N, Kw = weight.shape
    assert Kw == K, "weight must be (out_channels, in_channels)"
    lead_shape = x.shape[:-1]

    x2d = x.reshape(-1, K)
    M = x2d.shape[0]

    if bias is None:
        bias = jnp.zeros((N,), weight.dtype)
    b2d = bias.reshape(1, N)

    itemsize = jnp.dtype(x.dtype).itemsize
    budget, vmem_limit = _vmem_limits()
    mode, tm_e, tn_e, tk = _select_tiles(M, N, K, itemsize, budget,
                                         tm_hint=tm, tn_hint=tn)

    if mode == "A":
        # Grid (n, m): weight block index constant across the inner m axis
        # -> strip stays resident, weight read from HBM exactly once.
        grid = (pl.cdiv(N, tn_e), pl.cdiv(M, tm_e))
        out = pl.pallas_call(
            _linear_kernel_resident,
            out_shape=jax.ShapeDtypeStruct((M, N), x.dtype),
            grid_spec=pltpu.PrefetchScalarGridSpec(
                num_scalar_prefetch=0,
                grid=grid,
                in_specs=[
                    pl.BlockSpec((tm_e, K), lambda n, m: (m, 0)),   # activations
                    pl.BlockSpec((tn_e, K), lambda n, m: (n, 0)),   # weight strip
                    pl.BlockSpec((1, tn_e), lambda n, m: (0, n)),   # bias row
                ],
                out_specs=pl.BlockSpec((tm_e, tn_e), lambda n, m: (m, n)),
            ),
            compiler_params=pltpu.CompilerParams(
                dimension_semantics=("parallel", "parallel"),
                vmem_limit_bytes=vmem_limit,
            ),
        )(x2d, weight, b2d)
    else:
        # Mode B: K too large for a resident strip. Pad K to the tile so no
        # undefined data is ever accumulated.
        K_pad = _round_up(K, tk)
        if K_pad != K:
            x2d = jnp.pad(x2d, ((0, 0), (0, K_pad - K)))
            weight = jnp.pad(weight, ((0, 0), (0, K_pad - K)))
        grid = (pl.cdiv(N, tn_e), pl.cdiv(M, tm_e), K_pad // tk)
        out = pl.pallas_call(
            _linear_kernel_acc,
            out_shape=jax.ShapeDtypeStruct((M, N), x.dtype),
            grid_spec=pltpu.PrefetchScalarGridSpec(
                num_scalar_prefetch=0,
                grid=grid,
                in_specs=[
                    pl.BlockSpec((tm_e, tk), lambda n, m, k: (m, k)),
                    pl.BlockSpec((tn_e, tk), lambda n, m, k: (n, k)),
                    pl.BlockSpec((1, tn_e), lambda n, m, k: (0, n)),
                ],
                out_specs=pl.BlockSpec((tm_e, tn_e), lambda n, m, k: (m, n)),
                scratch_shapes=[pltpu.VMEM((tm_e, tn_e), jnp.float32)],
            ),
            compiler_params=pltpu.CompilerParams(
                dimension_semantics=("parallel", "parallel", "arbitrary"),
                vmem_limit_bytes=vmem_limit,
            ),
        )(x2d, weight, b2d)

    return out.reshape(*lead_shape, N)


# --------------------------------------------------------------------------
# Self-test
# --------------------------------------------------------------------------
if __name__ == "__main__":
    # Small shapes consistent with the module: (batch, seq, in_channels).
    batch, seq, in_channels, out_channels = 2, 8, 32, 48

    key = jax.random.PRNGKey(0)
    kx, kw, kb = jax.random.split(key, 3)

    # Deterministic parameter init mimicking nn.Linear's default
    # (uniform in [-1/sqrt(in), 1/sqrt(in)]).
    bound = 1.0 / jnp.sqrt(jnp.float32(in_channels))
    weight = jax.random.uniform(
        kw, (out_channels, in_channels), jnp.float32, -bound, bound)
    bias = jax.random.uniform(
        kb, (out_channels,), jnp.float32, -bound, bound)

    x = jax.random.normal(kx, (batch, seq, in_channels), jnp.float32)

    out = jax.block_until_ready(linear_norm(x, weight, bias))
    ref = x @ weight.T + bias
    assert out.shape == (batch, seq, out_channels)
    assert jnp.allclose(out, ref, atol=1e-4, rtol=1e-4)

    # Second (still small) case: non-tile-aligned M, non-128-aligned N.
    k2x, k2w, k2b = jax.random.split(jax.random.PRNGKey(1), 3)
    x2 = jax.random.normal(k2x, (4, 50, 256), jnp.float32)      # M = 200
    w2 = jax.random.normal(k2w, (384, 256), jnp.float32) * 0.05
    b2 = jax.random.normal(k2b, (384,), jnp.float32) * 0.05
    out2 = jax.block_until_ready(linear_norm(x2, w2, b2))
    ref2 = x2 @ w2.T + b2
    assert out2.shape == (4, 50, 384)
    assert jnp.allclose(out2, ref2, atol=1e-3, rtol=1e-3)

    # No-bias path.
    out3 = jax.block_until_ready(linear_norm(x2, w2, None))
    assert jnp.allclose(out3, x2 @ w2.T, atol=1e-3, rtol=1e-3)

    print("KERNEL_OK")
</pallas_src>

<mosaic_0001>
module attributes {stable_mosaic.version = 11 : i64} {
  func.func @_linear_kernel_resident(%arg0: i32, %arg1: i32, %arg2: memref<16x32xf32, #tpu.memory_space<vmem>>, %arg3: memref<48x32xf32, #tpu.memory_space<vmem>>, %arg4: memref<1x48xf32, #tpu.memory_space<vmem>>, %arg5: memref<16x48xf32, #tpu.memory_space<vmem>>) attributes {dimension_semantics = [#tpu.dimension_semantics<parallel>, #tpu.dimension_semantics<parallel>], iteration_bounds = array<i64: 1, 1>, scalar_prefetch = 0 : i64, scratch_operands = 0 : i64, tpu.core_type = #tpu.core_type<tc>, window_params = [{transform_indices = @transform_0, window_bounds = array<i64: 16, 32>}, {transform_indices = @transform_1, window_bounds = array<i64: 48, 32>}, {transform_indices = @transform_2, window_bounds = array<i64: 1, 48>}, {transform_indices = @transform_3, window_bounds = array<i64: 16, 48>}]} {
    %c0 = arith.constant 0 : index
    %c0_0 = arith.constant 0 : index
    %0 = vector.load %arg2[%c0, %c0_0] : memref<16x32xf32, #tpu.memory_space<vmem>>, vector<16x32xf32>
    %c0_1 = arith.constant 0 : index
    %c0_2 = arith.constant 0 : index
    %1 = vector.load %arg3[%c0_1, %c0_2] : memref<48x32xf32, #tpu.memory_space<vmem>>, vector<48x32xf32>
    %cst = arith.constant dense<0.000000e+00> : vector<16x48xf32>
    %2 = tpu.matmul %0, %1, %cst {dimension_numbers = #tpu.dot_dimension_numbers<[1], [1], [0], [0], [0, 0, 1, 0], [], []>} : vector<16x32xf32>, vector<48x32xf32>, vector<16x48xf32> -> vector<16x48xf32>
    %c0_3 = arith.constant 0 : index
    %c0_4 = arith.constant 0 : index
    %3 = vector.load %arg4[%c0_3, %c0_4] : memref<1x48xf32, #tpu.memory_space<vmem>>, vector<1x48xf32>
    %4 = vector.broadcast %3 : vector<1x48xf32> to vector<16x48xf32>
    %5 = arith.addf %2, %4 : vector<16x48xf32>
    %c0_5 = arith.constant 0 : index
    %c0_6 = arith.constant 0 : index
    %6 = vector.load %arg5[%c0_5, %c0_6] : memref<16x48xf32, #tpu.memory_space<vmem>>, vector<16x48xf32>
    tpu.vector_store %arg5[%c0_5, %c0_6], %5 {strides = array<i32>} : memref<16x48xf32, #tpu.memory_space<vmem>>, vector<16x48xf32>,
    return
  }
  func.func @transform_0(%arg0: i32, %arg1: i32) -> (i32, i32) {
    %c0_i32 = arith.constant 0 : i32
    %c0_i32_0 = arith.constant 0 : i32
    return %arg1, %c0_i32 : i32, i32
  }
  func.func @transform_1(%arg0: i32, %arg1: i32) -> (i32, i32) {
    %c0_i32 = arith.constant 0 : i32
    %c0_i32_0 = arith.constant 0 : i32
    return %arg0, %c0_i32 : i32, i32
  }
  func.func @transform_2(%arg0: i32, %arg1: i32) -> (i32, i32) {
    %c0_i32 = arith.constant 0 : i32
    %c0_i32_0 = arith.constant 0 : i32
    return %c0_i32, %arg0 : i32, i32
  }
  func.func @transform_3(%arg0: i32, %arg1: i32) -> (i32, i32) {
    %c0_i32 = arith.constant 0 : i32
    return %arg1, %arg0 : i32, i32
  }
}

</mosaic_0001>

<llo_original>
// kernel: linear_norm.1
$region0: #{linear_norm.1}
  #allocation0 [shape = 'u32[]', space=smem, size = 0x4, offset = 0x4, fixed_abs, tag = 'smem constant byte address 0x4 - core index']
  #allocation1 [shape = 'u32[72,128]{1,0:T(1,128)}', space=vmem, size = 0x9000, scoped, tag = 'internal scratch']
  %s0 = inlined_call_operand.vmem [shape: f32[16,32], index: 0, kind: input, shape index: {}]
  %s1 = inlined_call_operand.vmem [shape: f32[48,32], index: 1, kind: input, shape index: {}]
  %s2 = inlined_call_operand.vmem [shape: f32[1,48], index: 2, kind: input, shape index: {}]
  %s3 = inlined_call_operand.hbm [shape: f32[16,48], index: 3, kind: output, shape index: {}]
  %s4 = sld [smem:[#allocation0]]
  $region22: #{linear_norm.1} parent=0
    _
  %s6 = ssub.s32 1, %s4
  %s7 = scalar_select 0, %s6, %s4
  $region1: #{linear_norm.1} parent=0
    #allocation2 [shape = 'u8[8192]{0}', space=vmem, size = 0x2000, scoped, tag = 'output window, operand 0, single buffered']
    #allocation3 [shape = 's32[1]{0}', space=sflag, size = 0x4, scoped, tag = 'scoped memory for linear_norm.1']
    %8 = vsyncpa [#allocation3], 0
    // Predicated region
    $region2: #{linear_norm.1} parent=1 // pred_check
      _
    $region3: #{linear_norm.1} parent=1 // pred_check_branch
      %10 = sbr.rel (0) target = $region5
    $region4: #{linear_norm.1} parent=1 // pred_region
      _
    $region5: #{linear_norm.1} parent=1 // pred_fallthru
      _
    // Predicated region
    $region6: #{linear_norm.1} parent=1 // pred_check
      _
    $region7: #{linear_norm.1} parent=1 // pred_check_branch
      %12 = sbr.rel (0) target = $region9
    $region8: #{linear_norm.1} parent=1 // pred_region
      _
    $region9: #{linear_norm.1} parent=1 // pred_fallthru
      _
    // Predicated region
    $region10: #{linear_norm.1} parent=1 // pred_check
      _
    $region11: #{linear_norm.1} parent=1 // pred_check_branch
      %14 = sbr.rel (0) target = $region13
    $region12: #{linear_norm.1} parent=1 // pred_region
      _
    $region13: #{linear_norm.1} parent=1 // pred_fallthru
      _
    %v15 = vld [vmem:[%s0] sm:$0xff]
    %v16 = vld [vmem:[%s0 + $0x8] sm:$0xff]
    %v17 = vld [vmem:[%s1] sm:$0xff]
    %v18 = vld [vmem:[%s1 + $0x8] sm:$0xff]
    %v19 = vld [vmem:[%s1 + $0x10] sm:$0xff]
    %v20 = vld [vmem:[%s1 + $0x18] sm:$0xff]
    %v21 = vld [vmem:[%s1 + $0x20] sm:$0xff]
    %v22 = vld [vmem:[%s1 + $0x28] sm:$0xff]
    %v23 = vld [vmem:[%s2] sm:$0x1]
    %v25 = vperm.slane %v23, 0
    %vm27 = vcmask 261120
    %v29 = vsel %vm27, %v15, 0
    %v32 = vsel %vm27, %v16, 0
    %v35 = vsel %vm27, %v17, 0
    %v38 = vsel %vm27, %v18, 0
    %v41 = vsel %vm27, %v19, 0
    %v44 = vsel %vm27, %v20, 0
    %v47 = vsel %vm27, %v21, 0
    %v50 = vsel %vm27, %v22, 0
    %52 = vmatpush.xpose.msra.mxu0 0.0
    %53 = vmatpush.xpose.msra.mxu0 0.0
    %54 = vmatpush.xpose.msra.mxu0 0.0
    %55 = vmatpush.xpose.msra.mxu0 0.0
    %56 = vmatpush.xpose.msra.mxu0 0.0
    %57 = vmatpush.xpose.msra.mxu0 0.0
    %58 = vmatpush.xpose.msra.mxu0 0.0
    %59 = vmatpush.xpose.msra.mxu0 0.0
    %60 = vmatpush.xpose.msra.mxu0 0.0
    %61 = vmatpush.xpose.msra.mxu0 0.0
    %62 = vmatpush.xpose.msra.mxu0 %v50
    %63 = vmatpush.xpose.msra.mxu0 %v47
    %64 = vmatpush.xpose.msra.mxu0 %v44
    %65 = vmatpush.xpose.msra.mxu0 %v41
    %66 = vmatpush.xpose.msra.mxu0 %v38
    %67 = vmatpush.xpose.msra.mxu0 %v35
    %68 = vmatmul.f32.gmra.mxu0 %v29
    %v69 = vpop.f32.mrf.mxu0
    %v70 = vadd.f32 %v25, %v69
    %71 = vmatmul.f32.gmra.mxu0 %v32
    %v72 = vpop.f32.mrf.mxu0
    %v73 = vadd.f32 %v25, %v72
    %74 = vdwg.mxu0
    %vm75 = vcmask 392192
    %76 = vst.msk [vmem:[#allocation2] sm:$0xff] %vm75, %v70
    %77 = vst.msk [vmem:[#allocation2 + $0x8] sm:$0xff] %vm75, %v73
    // Predicated region
    $region14: #{linear_norm.1} parent=1 // pred_check
      _
    $region15: #{linear_norm.1} parent=1 // pred_check_branch
      %79 = sbr.rel (0) target = $region17
    $region16: #{linear_norm.1} parent=1 // pred_region
      %81 = vsyncadd [#allocation3], 0
      %s82 = sshll.u32 [#allocation2], 4
      %s83 = int_to_ptr.vmem [resolvable:$true] %s82
      %s84 = sshll.u32 %s3, 4
      %s85 = int_to_ptr.hbm [resolvable:$true] %s84
      %90 = dma.vmem_to_hbm [thread:$0]  %s83, 256, %s85, [#allocation3], 128, 128, 8
    $region17: #{linear_norm.1} parent=1 // pred_fallthru
      _
    // Predicated region
    $region18: #{linear_norm.1} parent=1 // pred_check
      _
    $region19: #{linear_norm.1} parent=1 // pred_check_branch
      %92 = sbr.rel (0) target = $region21
    $region20: #{linear_norm.1} parent=1 // pred_region
      %94 = dma.done [#allocation3], 256
    $region21: #{linear_norm.1} parent=1 // pred_fallthru
      _
    %95 = vsyncpa [#allocation3], 1

</llo_original>
